<compile_context>
chip_gen: v5e
topology: v5e:2x2
jax: 0.10.0
libtpu: 0.0.40
codegen_flags: <defaults>
</compile_context>

<pallas_src>
import functools

import jax
import jax.numpy as jnp
from jax import lax
from jax.experimental import pallas as pl
from jax.experimental.pallas import tpu as pltpu


def _focus_pow(u, gamma):
    """(1 - Pt)**gamma; repeated multiply for small integer gamma (avoids EUP pow)."""
    g = float(gamma)
    if g == float(int(g)) and 0 <= int(g) <= 8:
        n = int(g)
        if n == 0:
            return jnp.ones_like(u)
        r = u
        for _ in range(n - 1):
            r = r * u
        return r
    return jnp.power(u, g)


def _focal_kernel(logits_ref, tgt_ref, out_ref, acc_ref, *, gamma, alpha, hw, tile_hw):
    j = pl.program_id(1)  # spatial-tile index (reduction axis)

    @pl.when(j == 0)
    def _():
        acc_ref[...] = jnp.zeros_like(acc_ref)

    x = logits_ref[...].astype(jnp.float32)            # (C, tile_hw)
    tgt = tgt_ref[...]                                  # (1, tile_hw) int32

    # Numerically-stable log-softmax over the channel (sublane) axis.
    m = jnp.max(x, axis=0, keepdims=True)               # (1, tile_hw)
    ex = jnp.exp(x - m)
    lse = jnp.log(jnp.sum(ex, axis=0, keepdims=True)) + m

    # Gather the target-class logit via one-hot select (no dynamic gather on TPU).
    cls = lax.broadcasted_iota(jnp.int32, x.shape, 0)    # (C, tile_hw)
    logit_t = jnp.sum(jnp.where(cls == tgt, x, 0.0), axis=0, keepdims=True)

    logp_t = logit_t - lse                               # log P_t   (1, tile_hw)
    p_t = jnp.exp(logp_t)                                # P_t
    focus = _focus_pow(1.0 - p_t, gamma)                 # (1 - P_t)^y
    per_elem = (alpha * focus) * (-logp_t)               # per-pixel focal term

    # Mask out-of-range columns of a partial last tile (only if H*W % tile != 0).
    # TODO(synk): ignore_index-style target masking is not part of the PyTorch
    # module, so out-of-range class ids are not excluded here either.
    if hw % tile_hw != 0:
        col = j * tile_hw + lax.broadcasted_iota(jnp.int32, per_elem.shape, 1)
        per_elem = jnp.where(col < hw, per_elem, 0.0)

    acc_ref[...] += per_elem

    @pl.when(j == pl.num_programs(1) - 1)
    def _():
        total = jnp.sum(acc_ref[...])                    # one lane reduce per batch
        out_ref[...] = jnp.full(out_ref.shape, total, dtype=out_ref.dtype)


def focal_loss(output, target, y=2.0, *, tile_hw=8192):
    """output: (N, C, H, W) float logits; target: (N, H, W) int class ids."""
    N, C, H, W = output.shape
    HW = H * W
    M = N * HW

    # Pure reshape views — no HBM copies, no dtype upcast in the wrapper.
    logits = output.reshape(N, C, HW)
    tgt = target.reshape(N, 1, HW)
    if tgt.dtype != jnp.int32:
        tgt = tgt.astype(jnp.int32)

    # Lane tile over H*W: multiple of 128, capped by a modest per-buffer VMEM
    # budget (fits double-buffering comfortably even on v7x's smaller VMEM).
    bytes_per_col = C * output.dtype.itemsize + 4
    cap_cols = max(128, ((4 << 20) // max(bytes_per_col, 1)) // 128 * 128)
    t = min(int(tile_hw), cap_cols, max(128, (HW // 128) * 128))
    t = max(128, (t // 128) * 128)
    grid_hw = pl.cdiv(HW, t)

    kernel = functools.partial(
        _focal_kernel, gamma=float(y), alpha=0.25, hw=HW, tile_hw=t)

    partial = pl.pallas_call(
        kernel,
        out_shape=jax.ShapeDtypeStruct((N, 1, 128), jnp.float32),
        grid_spec=pltpu.PrefetchScalarGridSpec(
            num_scalar_prefetch=0,
            grid=(N, grid_hw),
            in_specs=[
                # channel on sublane, spatial on lane
                pl.BlockSpec((None, C, t), lambda n, j: (n, 0, j)),
                pl.BlockSpec((None, 1, t), lambda n, j: (n, 0, j)),
            ],
            out_specs=pl.BlockSpec((1, 1, 128), lambda n, j: (n, 0, 0)),
            scratch_shapes=[pltpu.VMEM((1, t), jnp.float32)],
        ),
        compiler_params=pltpu.CompilerParams(
            dimension_semantics=("parallel", "arbitrary")),
    )(logits, tgt)

    # mean over all N*H*W elements (matches weight_nll.mean() in PyTorch).
    return jnp.sum(partial[:, 0, 0]) / jnp.float32(M)


def _focal_loss_ref(output, target, y=2.0):
    """Pure-JAX reference mirroring the PyTorch module."""
    logp = jax.nn.log_softmax(output, axis=1)            # (N, C, H, W)
    logp_t = jnp.take_along_axis(logp, target[:, None, :, :], axis=1)
    p_t = jnp.exp(logp_t)
    return jnp.mean(0.25 * jnp.power(1.0 - p_t, y) * (-logp_t))


if __name__ == "__main__":
    key = jax.random.PRNGKey(0)
    k1, k2 = jax.random.split(key)

    N, C, H, W = 2, 4, 16, 16
    output = jax.random.normal(k1, (N, C, H, W), jnp.float32)
    target = jax.random.randint(k2, (N, H, W), 0, C)

    gamma = 2.0  # FocalLoss(y=2.0)
    loss = focal_loss(output, target, y=gamma)
    jax.block_until_ready(loss)

    ref = _focal_loss_ref(output, target, y=gamma)
    assert jnp.allclose(loss, ref, atol=1e-5, rtol=1e-5), (loss, ref)

    print("KERNEL_OK")
</pallas_src>

<mosaic_0001>
module attributes {stable_mosaic.version = 11 : i64} {
  func.func @_focal_kernel(%arg0: i32, %arg1: i32, %arg2: memref<1x4x256xf32, #tpu.memory_space<vmem>>, %arg3: memref<1x1x256xi32, #tpu.memory_space<vmem>>, %arg4: memref<1x1x128xf32, #tpu.memory_space<vmem>>, %arg5: memref<1x256xf32, #tpu.memory_space<vmem>>) attributes {dimension_semantics = [#tpu.dimension_semantics<parallel>, #tpu.dimension_semantics<arbitrary>], iteration_bounds = array<i64: 2, 1>, scalar_prefetch = 0 : i64, scratch_operands = 1 : i64, tpu.core_type = #tpu.core_type<tc>, window_params = [{transform_indices = @transform_0, window_bounds = array<i64: 1, 4, 256>}, {transform_indices = @transform_1, window_bounds = array<i64: 1, 1, 256>}, {transform_indices = @transform_2, window_bounds = array<i64: 1, 1, 128>}]} {
    %c0_i32 = arith.constant 0 : i32
    %0 = arith.cmpi eq, %arg1, %c0_i32 : i32
    %1 = arith.extui %0 : i1 to i32
    %c0_i32_0 = arith.constant 0 : i32
    %2 = arith.cmpi ne, %1, %c0_i32_0 : i32
    scf.if %2 {
      %cst_18 = arith.constant 0.000000e+00 : f32
      %39 = vector.broadcast %cst_18 : f32 to vector<1x256xf32>
      %c0_19 = arith.constant 0 : index
      %c0_20 = arith.constant 0 : index
      %40 = vector.load %arg5[%c0_19, %c0_20] : memref<1x256xf32, #tpu.memory_space<vmem>>, vector<1x256xf32>
      tpu.vector_store %arg5[%c0_19, %c0_20], %39 {strides = array<i32>} : memref<1x256xf32, #tpu.memory_space<vmem>>, vector<1x256xf32>,
    } else {
    }
    %c0 = arith.constant 0 : index
    %c0_1 = arith.constant 0 : index
    %c0_2 = arith.constant 0 : index
    %3 = vector.load %arg2[%c0, %c0_1, %c0_2] : memref<1x4x256xf32, #tpu.memory_space<vmem>>, vector<1x4x256xf32>
    %4 = vector.shape_cast %3 : vector<1x4x256xf32> to vector<4x256xf32>
    %c0_3 = arith.constant 0 : index
    %c0_4 = arith.constant 0 : index
    %c0_5 = arith.constant 0 : index
    %5 = vector.load %arg3[%c0_3, %c0_4, %c0_5] : memref<1x1x256xi32, #tpu.memory_space<vmem>>, vector<1x1x256xi32>
    %6 = vector.shape_cast %5 : vector<1x1x256xi32> to vector<1x256xi32>
    %cst = arith.constant dense<0xFF800000> : vector<256xf32>
    %7 = vector.multi_reduction <maximumf>, %4, %cst [0] : vector<4x256xf32> to vector<256xf32>
    %8 = vector.shape_cast %7 : vector<256xf32> to vector<1x256xf32>
    %9 = vector.broadcast %8 : vector<1x256xf32> to vector<4x256xf32>
    %10 = arith.subf %4, %9 : vector<4x256xf32>
    %11 = math.exp %10 : vector<4x256xf32>
    %cst_6 = arith.constant dense<0.000000e+00> : vector<256xf32>
    %12 = vector.multi_reduction <add>, %11, %cst_6 [0] : vector<4x256xf32> to vector<256xf32>
    %13 = vector.shape_cast %12 : vector<256xf32> to vector<1x256xf32>
    %14 = math.log %13 : vector<1x256xf32>
    %15 = arith.addf %14, %8 : vector<1x256xf32>
    %16 = tpu.iota {dimensions = array<i32: 0>} : vector<4x256xi32>
    %17 = vector.broadcast %6 : vector<1x256xi32> to vector<4x256xi32>
    %18 = arith.cmpi eq, %16, %17 : vector<4x256xi32>
    %cst_7 = arith.constant 0.000000e+00 : f32
    %19 = vector.broadcast %cst_7 : f32 to vector<4x256xf32>
    %20 = arith.select %18, %4, %19 : vector<4x256xi1>, vector<4x256xf32>
    %cst_8 = arith.constant dense<0.000000e+00> : vector<256xf32>
    %21 = vector.multi_reduction <add>, %20, %cst_8 [0] : vector<4x256xf32> to vector<256xf32>
    %22 = vector.shape_cast %21 : vector<256xf32> to vector<1x256xf32>
    %23 = arith.subf %22, %15 : vector<1x256xf32>
    %24 = math.exp %23 : vector<1x256xf32>
    %cst_9 = arith.constant 1.000000e+00 : f32
    %25 = vector.broadcast %cst_9 : f32 to vector<1x256xf32>
    %26 = arith.subf %25, %24 : vector<1x256xf32>
    %27 = arith.mulf %26, %26 : vector<1x256xf32>
    %cst_10 = arith.constant 2.500000e-01 : f32
    %28 = vector.broadcast %cst_10 : f32 to vector<1x256xf32>
    %29 = arith.mulf %28, %27 : vector<1x256xf32>
    %cst_11 = arith.constant 0.000000e+00 : f32
    %30 = vector.broadcast %cst_11 : f32 to vector<1x256xf32>
    %31 = arith.subf %30, %23 : vector<1x256xf32>
    %32 = arith.mulf %29, %31 : vector<1x256xf32>
    %c0_12 = arith.constant 0 : index
    %c0_13 = arith.constant 0 : index
    %33 = vector.load %arg5[%c0_12, %c0_13] : memref<1x256xf32, #tpu.memory_space<vmem>>, vector<1x256xf32>
    %34 = arith.addf %33, %32 : vector<1x256xf32>
    %c0_14 = arith.constant 0 : index
    %c0_15 = arith.constant 0 : index
    %35 = vector.load %arg5[%c0_14, %c0_15] : memref<1x256xf32, #tpu.memory_space<vmem>>, vector<1x256xf32>
    tpu.vector_store %arg5[%c0_14, %c0_15], %34 {strides = array<i32>} : memref<1x256xf32, #tpu.memory_space<vmem>>, vector<1x256xf32>,
    %c0_i32_16 = arith.constant 0 : i32
    %36 = arith.cmpi eq, %arg1, %c0_i32_16 : i32
    %37 = arith.extui %36 : i1 to i32
    %c0_i32_17 = arith.constant 0 : i32
    %38 = arith.cmpi ne, %37, %c0_i32_17 : i32
    scf.if %38 {
      %c0_18 = arith.constant 0 : index
      %c0_19 = arith.constant 0 : index
      %39 = vector.load %arg5[%c0_18, %c0_19] : memref<1x256xf32, #tpu.memory_space<vmem>>, vector<1x256xf32>
      %40 = vector.shape_cast %39 : vector<1x256xf32> to vector<1x1x256xf32>
      %cst_20 = arith.constant dense<0.000000e+00> : vector<1xf32>
      %41 = vector.multi_reduction <add>, %40, %cst_20 [1, 2] : vector<1x1x256xf32> to vector<1xf32>
      %42 = vector.shape_cast %41 : vector<1xf32> to vector<1x1x1xf32>
      %43 = vector.extract %42[0, 0, 0] : f32 from vector<1x1x1xf32>
      %44 = vector.broadcast %43 : f32 to vector<1x1x128xf32>
      %c0_21 = arith.constant 0 : index
      %c0_22 = arith.constant 0 : index
      %c0_23 = arith.constant 0 : index
      %45 = vector.load %arg4[%c0_21, %c0_22, %c0_23] : memref<1x1x128xf32, #tpu.memory_space<vmem>>, vector<1x1x128xf32>
      tpu.vector_store %arg4[%c0_21, %c0_22, %c0_23], %44 {strides = array<i32>} : memref<1x1x128xf32, #tpu.memory_space<vmem>>, vector<1x1x128xf32>,
    } else {
    }
    return
  }
  func.func @transform_0(%arg0: i32, %arg1: i32) -> (i32, i32, i32) {
    %c0_i32 = arith.constant 0 : i32
    %c0_i32_0 = arith.constant 0 : i32
    return %arg0, %c0_i32, %arg1 : i32, i32, i32
  }
  func.func @transform_1(%arg0: i32, %arg1: i32) -> (i32, i32, i32) {
    %c0_i32 = arith.constant 0 : i32
    %c0_i32_0 = arith.constant 0 : i32
    return %arg0, %c0_i32, %arg1 : i32, i32, i32
  }
  func.func @transform_2(%arg0: i32, %arg1: i32) -> (i32, i32, i32) {
    %c0_i32 = arith.constant 0 : i32
    %c0_i32_0 = arith.constant 0 : i32
    %c0_i32_1 = arith.constant 0 : i32
    return %arg0, %c0_i32, %c0_i32_0 : i32, i32, i32
  }
}

</mosaic_0001>

<llo_original>
// kernel: tpu_custom_call.1
$region0: #{tpu_custom_call.1}
  #allocation0 [shape = 'u32[]', space=smem, size = 0x4, offset = 0x4, fixed_abs, tag = 'smem constant byte address 0x4 - core index']
  #allocation1 [shape = 'u32[72,128]{1,0:T(1,128)}', space=vmem, size = 0x9000, scoped, tag = 'internal scratch']
  #allocation2 [shape = 'f32[1,256]{1,0:T(1,128)}', space=vmem, size = 0x400, scoped, tag = 'scratch operand']
  %s0 = inlined_call_operand.hbm [shape: f32[2,4,256], index: 0, kind: input, shape index: {}]
  %s1 = inlined_call_operand.hbm [shape: s32[2,1,256], index: 1, kind: input, shape index: {}]
  %s2 = inlined_call_operand.hbm [shape: f32[2,1,128], index: 2, kind: output, shape index: {}]
  %s3 = sld [smem:[#allocation0]]
  $region57: #{tpu_custom_call.1} parent=0
    _
  %s5 = ssub.s32 1, %s3
  %s6 = scalar_select 0, %s5, %s3
  $region1: #{tpu_custom_call.1} parent=0
    #allocation3 [shape = 'u8[8192]{0}', space=vmem, size = 0x2000, scoped, tag = 'input window, operand 0']
    #allocation4 [shape = 's32[2]{0}', space=sflag, size = 0x8, scoped, tag = 'scoped memory for tpu_custom_call.1']
    #allocation5 [shape = 's32[2]{0}', space=sflag, size = 0x8, scoped, tag = 'scoped memory for tpu_custom_call.1']
    #allocation6 [shape = 'u8[2048]{0}', space=vmem, size = 0x800, scoped, tag = 'input window, operand 1']
    #allocation7 [shape = 's32[2]{0}', space=sflag, size = 0x8, scoped, tag = 'scoped memory for tpu_custom_call.1']
    #allocation8 [shape = 'u8[1024]{0}', space=vmem, size = 0x400, scoped, tag = 'output window, operand 0']
    %7 = vsyncpa [#allocation4], 0
    %s8 = scalar_lea.sflag [#allocation4], 1
    %9 = vsyncpa %s8, 0
    %10 = vsyncpa [#allocation7], 0
    %s11 = scalar_lea.sflag [#allocation7], 1
    %12 = vsyncpa %s11, 0
    %13 = vsyncpa [#allocation5], 0
    %s14 = scalar_lea.sflag [#allocation5], 1
    %15 = vsyncpa %s14, 0
    loop: start=0, step=1, limit=4
    $region2: #{tpu_custom_call.1} parent=1 // loop_pre_header
      _
    $region3: #{tpu_custom_call.1} parent=1 // loop_header
      %s17 = sphi 0, %s21
      %p18 = scmp.ge.s32.totalorder %s17, 4
      %s24 = sphi 0, %s36
      %s25 = sphi 0, %s32
      %s26 = sphi 0, %s24
      %s27 = sphi 0, %s25
      %s28 = sphi 0, %s26
      %s29 = sphi 0, %s27
      %s41 = sphi 0, %s43
      %s44 = sphi 0, %s41
      %s45 = sphi 0, %s44
      %s61 = sphi 0, %s45
      %s69 = sphi 0, %s71
      %s72 = sphi 0, %s69
      %s73 = sphi 0, %s72
      %s89 = sphi 0, %s73
      %s95 = sphi 0, %s97
      %s98 = sphi 0, %s95
      %s99 = sphi 0, %s98
      %s115 = sphi 0, %s99
    $region4: #{tpu_custom_call.1} parent=1 // loop_header_branch
      %20 = sbr.rel (%p18) target = $region8
    $region5: #{tpu_custom_call.1} parent=1 // loop_body
      %s22 = ssub.s32 %s17, 1
      %s23 = ssub.s32 %s17, 2
      %s30 = sadd.s32 1, %s25
      %p31 = scmp.ge.s32.totalorder %s30, 1
      %s32 = scalar_select %p31, 0, %s30
      %s33 = sadd.s32 1, %s24
      %s34 = scalar_select %p31, %s33, %s24
      %p35 = scmp.ge.s32.totalorder %s34, 2
      %s36 = scalar_select %p35, 0, %s34
      %s37 = ssub.s32 %s24, %s36
      %s38 = ssub.s32 %s25, %s32
      %s39 = sor.u32 %s37, %s38
      %p40 = scmp.eq.s32.totalorder %s39, 0
      %s42 = sadd.s32 %s41, 1
      %s43 = scalar_select %p40, %s41, %s42
      %p46 = pneg %p40
      %p47 = scmp.eq.s32.totalorder %s17, 1
      %p48 = por %p46, %p47
      %p49 = scmp.ne.s32.totalorder %s41, %s44
      %p50 = scmp.eq.s32.totalorder %s17, 0
      %p51 = por %p49, %p50
      %p52 = scmp.ne.s32.totalorder %s41, %s44
      %p53 = scmp.eq.s32.totalorder %s22, 1
      %p54 = por %p52, %p53
      %p55 = scmp.ne.s32.totalorder %s44, %s45
      %p56 = scmp.eq.s32.totalorder %s22, 0
      %p57 = por %p55, %p56
      %p58 = scmp.ne.s32.totalorder %s44, %s45
      %p59 = scmp.eq.s32.totalorder %s23, 1
      %p60 = por %p58, %p59
      %p62 = scmp.ne.s32.totalorder %s45, %s61
      %p63 = scmp.eq.s32.totalorder %s23, 0
      %p64 = por %p62, %p63
      %s65 = ssub.s32 %s24, %s36
      %s66 = ssub.s32 %s25, %s32
      %s67 = sor.u32 %s65, %s66
      %p68 = scmp.eq.s32.totalorder %s67, 0
      %s70 = sadd.s32 %s69, 1
      %s71 = scalar_select %p68, %s69, %s70
      %p74 = pneg %p68
      %p75 = scmp.eq.s32.totalorder %s17, 1
      %p76 = por %p74, %p75
      %p77 = scmp.ne.s32.totalorder %s69, %s72
      %p78 = scmp.eq.s32.totalorder %s17, 0
      %p79 = por %p77, %p78
      %p80 = scmp.ne.s32.totalorder %s69, %s72
      %p81 = scmp.eq.s32.totalorder %s22, 1
      %p82 = por %p80, %p81
      %p83 = scmp.ne.s32.totalorder %s72, %s73
      %p84 = scmp.eq.s32.totalorder %s22, 0
      %p85 = por %p83, %p84
      %p86 = scmp.ne.s32.totalorder %s72, %s73
      %p87 = scmp.eq.s32.totalorder %s23, 1
      %p88 = por %p86, %p87
      %p90 = scmp.ne.s32.totalorder %s73, %s89
      %p91 = scmp.eq.s32.totalorder %s23, 0
      %p92 = por %p90, %p91
      %s93 = ssub.s32 %s24, %s36
      %p94 = scmp.eq.s32.totalorder %s93, 0
      %s96 = sadd.s32 %s95, 1
      %s97 = scalar_select %p94, %s95, %s96
      %p100 = pneg %p94
      %p101 = scmp.eq.s32.totalorder %s17, 1
      %p102 = por %p100, %p101
      %p103 = scmp.ne.s32.totalorder %s95, %s98
      %p104 = scmp.eq.s32.totalorder %s17, 0
      %p105 = por %p103, %p104
      %p106 = scmp.ne.s32.totalorder %s95, %s98
      %p107 = scmp.eq.s32.totalorder %s22, 1
      %p108 = por %p106, %p107
      %p109 = scmp.ne.s32.totalorder %s98, %s99
      %p110 = scmp.eq.s32.totalorder %s22, 0
      %p111 = por %p109, %p110
      %p112 = scmp.ne.s32.totalorder %s98, %s99
      %p113 = scmp.eq.s32.totalorder %s23, 1
      %p114 = por %p112, %p113
      %p116 = scmp.ne.s32.totalorder %s99, %s115
      %p117 = scmp.eq.s32.totalorder %s23, 0
      %p118 = por %p116, %p117
      %p119 = scmp.le.s32.totalorder 1, %s17
      %p120 = scmp.lt.s32.totalorder %s17, 3
      %p121 = pnand %p119, %p120
      %p122 = pneg %p121
      // Predicated region
      $region9: #{tpu_custom_call.1} parent=5 // pred_check
        _
      $region10: #{tpu_custom_call.1} parent=5 // pred_check_branch
        %124 = sbr.rel (%p121) target = $region12
      $region11: #{tpu_custom_call.1} parent=5 // pred_region
        %s125 = ssub.s32 %s17, 1
      $region12: #{tpu_custom_call.1} parent=5 // pred_fallthru
        _
      %p126 = scmp.lt.s32.totalorder %s17, 2
      // Predicated region
      $region13: #{tpu_custom_call.1} parent=5 // pred_check
        %p127 = pneg %p126
      $region14: #{tpu_custom_call.1} parent=5 // pred_check_branch
        %129 = sbr.rel (%p127) target = $region16
      $region15: #{tpu_custom_call.1} parent=5 // pred_region
        // Predicated region
        $region17: #{tpu_custom_call.1} parent=15 // pred_check
          %p130 = pneg %p51
        $region18: #{tpu_custom_call.1} parent=15 // pred_check_branch
          %132 = sbr.rel (%p130) target = $region20
        $region19: #{tpu_custom_call.1} parent=15 // pred_region
          %s133 = sand.u32 %s41, 1
          %s134 = scalar_lea.sflag [#allocation4], %s133
          %s135 = sand.u32 %s41, 1
          %s136 = smul.addr %s135, 8
          %s137 = scalar_lea.vmem [#allocation3], %s136
          %s138 = smul.u32 2, %s25
          %140 = vsyncadd %s134, 0
          %s141 = smul.addr %s24, 2
          %s142 = sadd.s32 %s138, %s141
          %s143 = smul.addr %s142, 4
          %s144 = scalar_lea.hbm %s0, %s143
          %s146 = sshll.u32 %s144, 4
          %s147 = int_to_ptr.hbm [resolvable:$true] %s146
          %s148 = sshll.u32 %s137, 4
          %s149 = int_to_ptr.vmem [resolvable:$true] %s148
          %151 = dma.hbm_to_vmem [thread:$0]  %s147, 128, %s149, %s134
        $region20: #{tpu_custom_call.1} parent=15 // pred_fallthru
          _
        // Predicated region
        $region21: #{tpu_custom_call.1} parent=15 // pred_check
          %p152 = pneg %p79
        $region22: #{tpu_custom_call.1} parent=15 // pred_check_branch
          %154 = sbr.rel (%p152) target = $region24
        $region23: #{tpu_custom_call.1} parent=15 // pred_region
          %s155 = sand.u32 %s69, 1
          %s156 = scalar_lea.sflag [#allocation7], %s155
          %s157 = sand.u32 %s69, 1
          %s158 = smul.addr %s157, 2
          %s159 = scalar_lea.vmem [#allocation6], %s158
          %s160 = smul.u32 2, %s25
          %162 = vsyncadd %s156, 0
          %s163 = smul.addr %s24, 2
          %s164 = sadd.s32 %s160, %s163
          %s165 = scalar_lea.hbm %s1, %s164
          %s167 = sshll.u32 %s165, 4
          %s168 = int_to_ptr.hbm [resolvable:$true] %s167
          %s169 = sshll.u32 %s159, 4
          %s170 = int_to_ptr.vmem [resolvable:$true] %s169
          %172 = dma.hbm_to_vmem [thread:$0]  %s168, 32, %s170, %s156
        $region24: #{tpu_custom_call.1} parent=15 // pred_fallthru
          _
      $region16: #{tpu_custom_call.1} parent=5 // pred_fallthru
        _
      %p173 = scmp.le.s32.totalorder 1, %s17
      %p174 = scmp.lt.s32.totalorder %s17, 3
      %p175 = pnand %p173, %p174
      %p176 = pneg %p175
      // Predicated region
      $region25: #{tpu_custom_call.1} parent=5 // pred_check
        _
      $region26: #{tpu_custom_call.1} parent=5 // pred_check_branch
        %178 = sbr.rel (%p175) target = $region28
      $region27: #{tpu_custom_call.1} parent=5 // pred_region
        %s179 = ssub.s32 %s17, 1
        %s180 = sand.u32 %s44, 1
        %s181 = scalar_lea.sflag [#allocation4], %s180
        %s182 = sand.u32 %s44, 1
        %s183 = smul.addr %s182, 8
        %s184 = scalar_lea.vmem [#allocation3], %s183
        // Predicated region
        $region29: #{tpu_custom_call.1} parent=27 // pred_check
          %p185 = pneg %p57
        $region30: #{tpu_custom_call.1} parent=27 // pred_check_branch
          %187 = sbr.rel (%p185) target = $region32
        $region31: #{tpu_custom_call.1} parent=27 // pred_region
          %189 = dma.done %s181, 128
        $region32: #{tpu_custom_call.1} parent=27 // pred_fallthru
          _
        %s190 = sand.u32 %s72, 1
        %s191 = scalar_lea.sflag [#allocation7], %s190
        %s192 = sand.u32 %s72, 1
        %s193 = smul.addr %s192, 2
        %s194 = scalar_lea.vmem [#allocation6], %s193
        // Predicated region
        $region33: #{tpu_custom_call.1} parent=27 // pred_check
          %p195 = pneg %p85
        $region34: #{tpu_custom_call.1} parent=27 // pred_check_branch
          %197 = sbr.rel (%p195) target = $region36
        $region35: #{tpu_custom_call.1} parent=27 // pred_region
          %199 = dma.done %s191, 32
        $region36: #{tpu_custom_call.1} parent=27 // pred_fallthru
          _
        %s200 = sand.u32 %s44, 1
        %s201 = scalar_lea.sflag [#allocation4], %s200
        %s202 = sand.u32 %s44, 1
        %s203 = smul.addr %s202, 8
        %s204 = scalar_lea.vmem [#allocation3], %s203
        %p205 = pneg %p57
        %p206 = pneg %p54
        %s207 = sand.u32 %s72, 1
        %s208 = scalar_lea.sflag [#allocation7], %s207
        %s209 = sand.u32 %s72, 1
        %s210 = smul.addr %s209, 2
        %s211 = scalar_lea.vmem [#allocation6], %s210
        %p212 = pneg %p85
        %p213 = pneg %p82
        %p214 = pneg %p111
        %p215 = pneg %p108
        %s216 = sand.u32 %s98, 1
        %s217 = scalar_lea.sflag [#allocation5], %s216
        %s218 = sand.u32 %s98, 1
        %s219 = scalar_lea.vmem [#allocation8], %s218
        %s220 = smul.u32 2, %s27
        %s221 = smul.u32 2, %s27
        %p222 = scmp.eq.s32.totalorder %s27, 0
        // Predicated region
        $region37: #{tpu_custom_call.1} parent=27 // pred_check
          %p223 = pneg %p222
        $region38: #{tpu_custom_call.1} parent=27 // pred_check_branch
          %225 = sbr.rel (%p223) target = $region40
        $region39: #{tpu_custom_call.1} parent=27 // pred_region
          %v226 = vlaneseq
          %vm227 = vcmp.ge.s32.totalorder %v226, 0
          %vm228 = vcmp.lt.s32.totalorder %v226, 256
          %vm229 = vmand %vm227, %vm228
          %230 = vst.msk [vmem:[#allocation2] sm:$0x3] %vm229, 0.0
        $region40: #{tpu_custom_call.1} parent=27 // pred_fallthru
          _
        %v231 = vld [vmem:[%s184] sm:$0xff]
        %v232 = vld [vmem:[%s194] sm:$0x3]
        %234 = vst [vmem:[#allocation1] ss:$2 sm:$0xff] %v231
        %v235 = vld.sshfl [vmem:[#allocation1] sm:$0xff pattern:$0x75316420]
        %v236 = vld.sshfl [vmem:[#allocation1 + $0x8] sm:$0xff pattern:$0x75316420]
        %vm239 = vcmask 1043456
        %v240 = vsel %vm239, %v235, -inf
        %v241 = vrot.slane %v240, 4
        %v242 = vmax.f32 %v240, %v241
        %v243 = vrot.slane %v242, 2
        %v244 = vmax.f32 %v242, %v243
        %v245 = vrot.slane %v244, 1
        %v246 = vmax.f32 %v244, %v245
        %v247 = vsel %vm239, %v236, -inf
        %v248 = vrot.slane %v247, 4
        %v249 = vmax.f32 %v247, %v248
        %v250 = vrot.slane %v249, 2
        %v251 = vmax.f32 %v249, %v250
        %v252 = vrot.slane %v251, 1
        %v253 = vmax.f32 %v251, %v252
        %v256 = vrot.slane %v253, 4
        %v257 = vsel %vm239, %v246, %v256
        %v259 = vsub.f32 %v231, %v257
        %v260 = vmul.f32 %v259, 1.442695
        %v261 = vpow.pop %v260
        %263 = vst [vmem:[#allocation1] ss:$2 sm:$0xff] %v261
        %v264 = vld.sshfl [vmem:[#allocation1] sm:$0xff pattern:$0x75316420]
        %v265 = vld.sshfl [vmem:[#allocation1 + $0x8] sm:$0xff pattern:$0x75316420]
        %v268 = vsel %vm239, %v264, 0.0
        %v269 = vrot.slane %v268, 4
        %v270 = vadd.f32 %v268, %v269
        %v271 = vrot.slane %v270, 2
        %v272 = vadd.f32 %v270, %v271
        %v273 = vrot.slane %v272, 1
        %v274 = vadd.f32 %v272, %v273
        %v275 = vsel %vm239, %v265, 0.0
        %v276 = vrot.slane %v275, 4
        %v277 = vadd.f32 %v275, %v276
        %v278 = vrot.slane %v277, 2
        %v279 = vadd.f32 %v277, %v278
        %v280 = vrot.slane %v279, 1
        %v281 = vadd.f32 %v279, %v280
        %v282 = vlog2.pop %v274
        %v283 = vmul.f32 %v282, 0.6931472
        %v284 = vlog2.pop %v281
        %v285 = vmul.f32 %v284, 0.6931472
        %v286 = vadd.f32 %v283, %v246
        %v287 = vadd.f32 %v285, %v253
        %v288 = vlaneseq
        %v289 = vshrl.u32 %v288, 7
        %v290 = vperm.slane %v232, 0
        %v291 = vperm.slane %v232, 1
        %vm292 = vcmp.eq.s32.totalorder %v289, %v290
        %vm293 = vcmp.eq.s32.totalorder %v289, %v291
        %294 = vst [vmem:[#allocation1] ss:$2 sm:$0xff] %v231
        %v295 = vld.sshfl [vmem:[#allocation1] sm:$0xff pattern:$0x75316420]
        %v296 = vld.sshfl [vmem:[#allocation1 + $0x8] sm:$0xff pattern:$0x75316420]
        %v299 = vsel %vm292, %v295, 0.0
        %v300 = vsel %vm293, %v296, 0.0
        %v301 = vsel %vm239, %v299, 0.0
        %v302 = vrot.slane %v301, 4
        %v303 = vadd.f32 %v301, %v302
        %v304 = vrot.slane %v303, 2
        %v305 = vadd.f32 %v303, %v304
        %v306 = vrot.slane %v305, 1
        %v307 = vadd.f32 %v305, %v306
        %v308 = vsel %vm239, %v300, 0.0
        %v309 = vrot.slane %v308, 4
        %v310 = vadd.f32 %v308, %v309
        %v311 = vrot.slane %v310, 2
        %v312 = vadd.f32 %v310, %v311
        %v313 = vrot.slane %v312, 1
        %v314 = vadd.f32 %v312, %v313
        %v315 = vsub.f32 %v307, %v286
        %v316 = vsub.f32 %v314, %v287
        %v317 = vmul.f32 %v315, 1.442695
        %v318 = vpow.pop %v317
        %v319 = vmul.f32 %v316, 1.442695
        %v320 = vpow.pop %v319
        %v321 = vsub.f32 1.0, %v318
        %v322 = vsub.f32 1.0, %v320
        %v323 = vmul.f32 %v321, %v321
        %v324 = vmul.f32 %v322, %v322
        %v325 = vmul.f32 %v323, 0.25
        %v326 = vmul.f32 %v324, 0.25
        %v327 = vsub.f32 0.0, %v315
        %v328 = vsub.f32 0.0, %v316
        %v329 = vmul.f32 %v325, %v327
        %v330 = vmul.f32 %v326, %v328
        %v331 = vld [vmem:[#allocation2] sm:$0x3]
        %v334 = vrot.slane %v330, 7
        %vm335 = vcmask 1040384
        %v336 = vsel %vm335, %v329, %v334
        %v338 = vadd.f32 %v331, %v336
        %v339 = vlaneseq
        %vm340 = vcmp.ge.s32.totalorder %v339, 0
        %vm341 = vcmp.lt.s32.totalorder %v339, 256
        %vm342 = vmand %vm340, %vm341
        %343 = vst.msk [vmem:[#allocation2] sm:$0x3] %vm342, %v338
        // Predicated region
        $region41: #{tpu_custom_call.1} parent=27 // pred_check
          %p344 = pneg %p222
        $region42: #{tpu_custom_call.1} parent=27 // pred_check_branch
          %346 = sbr.rel (%p344) target = $region44
        $region43: #{tpu_custom_call.1} parent=27 // pred_region
          %v347 = vld [vmem:[#allocation2] sm:$0x3]
          %v349 = vperm.slane %v347, 0
          %v350 = vperm.slane %v347, 1
          %v353 = vsel %vm335, %v349, 0.0
          %v354 = vsel %vm335, %v350, 0.0
          %v355 = vadd.f32 %v353, %v354
          %356 = vadd.xlane.f32.xlu0 %v355
          %v357 = vpop.xlane.xlu0 %356
          %v358 = vrot.slane %v357, 4
          %v359 = vadd.f32 %v357, %v358
          %v360 = vrot.slane %v359, 2
          %v361 = vadd.f32 %v359, %v360
          %v362 = vrot.slane %v361, 1
          %v363 = vadd.f32 %v361, %v362
          %s364 = vtos %v363
          %v365 = vstv %s364
          %366 = vst [vmem:[%s219] sm:$0x1] %v365
        $region44: #{tpu_custom_call.1} parent=27 // pred_fallthru
          _
        %s367 = sand.u32 %s98, 1
        %s368 = scalar_lea.sflag [#allocation5], %s367
        %s369 = sand.u32 %s98, 1
        %s370 = scalar_lea.vmem [#allocation8], %s369
        // Predicated region
        $region45: #{tpu_custom_call.1} parent=27 // pred_check
          %p371 = pneg %p108
        $region46: #{tpu_custom_call.1} parent=27 // pred_check_branch
          %373 = sbr.rel (%p371) target = $region48
        $region47: #{tpu_custom_call.1} parent=27 // pred_region
          %375 = vsyncadd %s368, 0
          %s376 = scalar_lea.hbm %s2, %s26
          %s378 = sshll.u32 %s370, 4
          %s379 = int_to_ptr.vmem [resolvable:$true] %s378
          %s380 = sshll.u32 %s376, 4
          %s381 = int_to_ptr.hbm [resolvable:$true] %s380
          %383 = dma.vmem_to_hbm [thread:$0]  %s379, 16, %s381, %s368
        $region48: #{tpu_custom_call.1} parent=27 // pred_fallthru
          _
      $region28: #{tpu_custom_call.1} parent=5 // pred_fallthru
        _
      %p384 = scmp.le.s32.totalorder 2, %s17
      // Predicated region
      $region49: #{tpu_custom_call.1} parent=5 // pred_check
        %p385 = pneg %p384
      $region50: #{tpu_custom_call.1} parent=5 // pred_check_branch
        %387 = sbr.rel (%p385) target = $region52
      $region51: #{tpu_custom_call.1} parent=5 // pred_region
        %s388 = ssub.s32 %s17, 2
        // Predicated region
        $region53: #{tpu_custom_call.1} parent=51 // pred_check
          %p389 = pneg %p114
        $region54: #{tpu_custom_call.1} parent=51 // pred_check_branch
          %391 = sbr.rel (%p389) target = $region56
        $region55: #{tpu_custom_call.1} parent=51 // pred_region
          %s392 = sand.u32 %s99, 1
          %s393 = scalar_lea.sflag [#allocation5], %s392
          %s394 = sand.u32 %s99, 1
          %s395 = scalar_lea.vmem [#allocation8], %s394
          %397 = dma.done %s393, 16
        $region56: #{tpu_custom_call.1} parent=51 // pred_fallthru
          _
      $region52: #{tpu_custom_call.1} parent=5 // pred_fallthru
        _
    $region6: #{tpu_custom_call.1} parent=1 // loop_footer
      %s21 = sadd.s32 1, %s17
    $region7: #{tpu_custom_call.1} parent=1 // loop_footer_branch
      %16 = sbr.rel target = $region3
    $region8: #{tpu_custom_call.1} parent=1 // loop_exit
      _
    %398 = vsyncpa [#allocation4], 1
    %s399 = scalar_lea.sflag [#allocation4], 1
    %400 = vsyncpa %s399, 1
    %401 = vsyncpa [#allocation7], 1
    %s402 = scalar_lea.sflag [#allocation7], 1
    %403 = vsyncpa %s402, 1
    %404 = vsyncpa [#allocation5], 1
    %s405 = scalar_lea.sflag [#allocation5], 1
    %406 = vsyncpa %s405, 1

</llo_original>
